<compile_context>
chip_gen: v6e
topology: v6e:2x2x1
jax: 0.10.0
libtpu: 0.0.40
codegen_flags: <defaults>
</compile_context>

<pallas_src>
import functools
import math

import jax
import jax.numpy as jnp
from jax.experimental import pallas as pl
from jax.experimental.pallas import tpu as pltpu


def _seq_group_norm_kernel(x_ref, g_ref, b_ref, o_ref, *, eps, n_chan, hw, inv_d):
    # x_ref/o_ref: (TR, D) with D = n_chan * hw; g_ref/b_ref: (TR, n_chan) f32.
    rows = x_ref.shape[0]

    # ---- Pass 1: fused one-pass statistics (no whole-tile f32 temporary) ----
    s1 = jnp.zeros((rows, 1), jnp.float32)
    s2 = jnp.zeros((rows, 1), jnp.float32)
    for c in range(n_chan):            # static unroll; GroupNorm n_chan is small
        seg = x_ref[:, c * hw:(c + 1) * hw].astype(jnp.float32)
        s1 = s1 + jnp.sum(seg, axis=-1, keepdims=True)
        s2 = s2 + jnp.sum(seg * seg, axis=-1, keepdims=True)
    mean = s1 * inv_d                                        # (TR, 1)
    # One-pass (biased) variance; clamp against cancellation before rsqrt.
    var = jnp.maximum(s2 * inv_d - mean * mean, 0.0)
    inv = jax.lax.rsqrt(var + eps)                           # (TR, 1)

    # ---- Hoisted per-(row, channel) affine ---------------------------------
    scale_all = inv * g_ref[...]                             # (TR, n_chan)
    shift_all = b_ref[...] - mean * scale_all                # (TR, n_chan)

    # ---- Pass 2: normalize + affine as one FMA over lane-aligned segments --
    for c in range(n_chan):
        lo = c * hw
        seg = x_ref[:, lo:lo + hw].astype(jnp.float32)
        o_ref[:, lo:lo + hw] = (seg * scale_all[:, c:c + 1]
                                + shift_all[:, c:c + 1]).astype(o_ref.dtype)
    # Note: for very large C//G (>~32) a lax.fori_loop over channels (or a
    # whole-tile broadcast form when H*W % 128 != 0) would bound live ranges;
    # not needed for typical GroupNorm configs like this module's.


def sequence_group_norm_2d(v, gamma, beta, *, num_groups, eps=1e-5,
                           target_block_bytes=2 * 1024 * 1024,
                           min_grid_steps=4):
    """v: (B, S, C, H, W); gamma, beta: (C,). Returns (B, S, C, H, W)."""
    B, S, C, H, W = v.shape
    G = num_groups
    assert C % G == 0, "embed_dim must be divisible by num_groups"
    Cg = C // G
    HW = H * W
    D = Cg * HW
    R = B * S * G                      # one normalization row per (sample, group)

    # Sublane packing granularity: 8 rows (32-bit) / 16 rows (16-bit dtypes).
    sub = 16 if v.dtype.itemsize == 2 else 8
    TP = (G * sub) // math.gcd(G, sub)  # lcm(G, sub): period of the gamma pattern

    x = v.reshape(R, D)                 # row r -> sample r // G, group r % G
    num_units = -(-R // TP)             # ceil(R / TP)

    # ---- row-block sizing ---------------------------------------------------
    itemsize = v.dtype.itemsize
    unit_in_bytes = TP * D * itemsize   # one TP-row unit of x, input dtype
    # Real per-unit VMEM cost: double-buffered input + output blocks plus ~3
    # transient f32 channel segments live inside the kernel.
    unit_vmem_cost = 4 * unit_in_bytes + 3 * TP * HW * 4

    TB = max(1, target_block_bytes // unit_in_bytes)
    TB = min(TB, max(1, (36 * 1024 * 1024) // unit_vmem_cost))   # VMEM safety cap
    TB = min(TB, max(1, R // TP))
    if num_units >= min_grid_steps:     # >= 2-3 steps per v7x TensorCore
        TB = min(TB, max(1, num_units // min_grid_steps))
    # Prefer a TB that divides num_units (avoids a masked edge block) if close.
    for t in range(TB, max(1, TB // 2) - 1, -1):
        if num_units % t == 0:
            TB = t
            break
    TR = TB * TP
    grid = (-(-num_units // TB),)       # cdiv; remainder rows masked by Pallas
    # (If a single TP-row unit ever exceeded VMEM -- huge (C/G)*H*W -- a second
    #  grid axis over D would be required; here TB simply bottoms out at 1.)

    # Tiny, resident per-row affine parameters: block-local row r -> group r % G.
    g_rows = jnp.tile(jnp.reshape(gamma.astype(jnp.float32), (G, Cg)), (TR // G, 1))
    b_rows = jnp.tile(jnp.reshape(beta.astype(jnp.float32), (G, Cg)), (TR // G, 1))

    vmem_est = TB * unit_vmem_cost + 2 * TR * Cg * 4
    vmem_limit = int(min(48 * 1024 * 1024, max(32 * 1024 * 1024, 2 * vmem_est)))

    out = pl.pallas_call(
        functools.partial(_seq_group_norm_kernel, eps=eps, n_chan=Cg, hw=HW,
                          inv_d=1.0 / D),
        out_shape=jax.ShapeDtypeStruct((R, D), v.dtype),
        grid_spec=pltpu.PrefetchScalarGridSpec(
            num_scalar_prefetch=0,
            grid=grid,
            in_specs=[
                pl.BlockSpec((TR, D), lambda i: (i, 0)),
                pl.BlockSpec((TR, Cg), lambda i: (0, 0)),   # loaded once, resident
                pl.BlockSpec((TR, Cg), lambda i: (0, 0)),
            ],
            out_specs=pl.BlockSpec((TR, D), lambda i: (i, 0)),
        ),
        compiler_params=pltpu.CompilerParams(
            dimension_semantics=("parallel",),
            vmem_limit_bytes=vmem_limit,
        ),
    )(x, g_rows, b_rows)

    return out.reshape(B, S, C, H, W)


def _reference_group_norm(v, gamma, beta, *, num_groups, eps=1e-5):
    B, S, C, H, W = v.shape
    G = num_groups
    x = v.reshape(B * S, G, (C // G) * H * W).astype(jnp.float32)
    mean = jnp.mean(x, axis=-1, keepdims=True)
    var = jnp.mean((x - mean) ** 2, axis=-1, keepdims=True)
    y = (x - mean) * jax.lax.rsqrt(var + eps)
    y = y.reshape(B * S, C, H * W)
    y = y * gamma[None, :, None] + beta[None, :, None]
    return y.reshape(B, S, C, H, W).astype(v.dtype)


if __name__ == "__main__":
    # Module config: SequenceGroupNorm2d(num_groups=2, embed_dim=4)
    num_groups = 2
    embed_dim = 4

    key = jax.random.PRNGKey(0)
    kx, kg, kb, kx2 = jax.random.split(key, 4)
    # Deterministic parameter init (synthetic; PyTorch default would be ones/zeros).
    gamma = 1.0 + 0.1 * jax.random.normal(kg, (embed_dim,), dtype=jnp.float32)
    beta = 0.1 * jax.random.normal(kb, (embed_dim,), dtype=jnp.float32)

    # Main config: (B, S, C, H, W) = (2, 8, 4, 16, 16).
    B, S, H, W = 2, 8, 16, 16
    v = jax.random.normal(kx, (B, S, embed_dim, H, W), dtype=jnp.float32)
    out = jax.block_until_ready(
        sequence_group_norm_2d(v, gamma, beta, num_groups=num_groups))
    ref = _reference_group_norm(v, gamma, beta, num_groups=num_groups)
    assert out.shape == v.shape
    assert jnp.allclose(out, ref, atol=2e-5, rtol=1e-5), \
        float(jnp.max(jnp.abs(out.astype(jnp.float32) - ref.astype(jnp.float32))))

    # Ragged row count (R = B*S*G not a multiple of the row block): exercises the
    # masked edge block -- no host-side pad / slice HBM passes are needed.
    v2 = jax.random.normal(kx2, (1, 5, embed_dim, H, W), dtype=jnp.float32)
    out2 = jax.block_until_ready(
        sequence_group_norm_2d(v2, gamma, beta, num_groups=num_groups))
    ref2 = _reference_group_norm(v2, gamma, beta, num_groups=num_groups)
    assert out2.shape == v2.shape
    assert jnp.allclose(out2, ref2, atol=2e-5, rtol=1e-5), \
        float(jnp.max(jnp.abs(out2.astype(jnp.float32) - ref2.astype(jnp.float32))))

    print("KERNEL_OK")
</pallas_src>

<mosaic_0001>
module attributes {stable_mosaic.version = 11 : i64} {
  func.func @_seq_group_norm_kernel(%arg0: i32, %arg1: memref<8x512xf32, #tpu.memory_space<vmem>>, %arg2: memref<8x2xf32, #tpu.memory_space<vmem>>, %arg3: memref<8x2xf32, #tpu.memory_space<vmem>>, %arg4: memref<8x512xf32, #tpu.memory_space<vmem>>) attributes {dimension_semantics = [#tpu.dimension_semantics<parallel>], iteration_bounds = array<i64: 4>, scalar_prefetch = 0 : i64, scratch_operands = 0 : i64, tpu.core_type = #tpu.core_type<tc>, window_params = [{transform_indices = @transform_0, window_bounds = array<i64: 8, 512>}, {pipeline_mode = #tpu.pipeline_mode<synchronous>, transform_indices = @transform_1, window_bounds = array<i64: 8, 2>}, {pipeline_mode = #tpu.pipeline_mode<synchronous>, transform_indices = @transform_2, window_bounds = array<i64: 8, 2>}, {transform_indices = @transform_3, window_bounds = array<i64: 8, 512>}]} {
    %cst = arith.constant 0.000000e+00 : f32
    %0 = vector.broadcast %cst : f32 to vector<8x1xf32>
    %cst_0 = arith.constant 0.000000e+00 : f32
    %1 = vector.broadcast %cst_0 : f32 to vector<8x1xf32>
    %c0 = arith.constant 0 : index
    %c0_1 = arith.constant 0 : index
    %2 = vector.load %arg1[%c0, %c0_1] : memref<8x512xf32, #tpu.memory_space<vmem>>, vector<8x256xf32>
    %cst_2 = arith.constant dense<0.000000e+00> : vector<8xf32>
    %3 = vector.multi_reduction <add>, %2, %cst_2 [1] : vector<8x256xf32> to vector<8xf32>
    %4 = vector.shape_cast %3 : vector<8xf32> to vector<8x1xf32>
    %5 = arith.addf %0, %4 : vector<8x1xf32>
    %6 = arith.mulf %2, %2 : vector<8x256xf32>
    %cst_3 = arith.constant dense<0.000000e+00> : vector<8xf32>
    %7 = vector.multi_reduction <add>, %6, %cst_3 [1] : vector<8x256xf32> to vector<8xf32>
    %8 = vector.shape_cast %7 : vector<8xf32> to vector<8x1xf32>
    %9 = arith.addf %1, %8 : vector<8x1xf32>
    %c0_4 = arith.constant 0 : index
    %c256 = arith.constant 256 : index
    %10 = vector.load %arg1[%c0_4, %c256] : memref<8x512xf32, #tpu.memory_space<vmem>>, vector<8x256xf32>
    %cst_5 = arith.constant dense<0.000000e+00> : vector<8xf32>
    %11 = vector.multi_reduction <add>, %10, %cst_5 [1] : vector<8x256xf32> to vector<8xf32>
    %12 = vector.shape_cast %11 : vector<8xf32> to vector<8x1xf32>
    %13 = arith.addf %5, %12 : vector<8x1xf32>
    %14 = arith.mulf %10, %10 : vector<8x256xf32>
    %cst_6 = arith.constant dense<0.000000e+00> : vector<8xf32>
    %15 = vector.multi_reduction <add>, %14, %cst_6 [1] : vector<8x256xf32> to vector<8xf32>
    %16 = vector.shape_cast %15 : vector<8xf32> to vector<8x1xf32>
    %17 = arith.addf %9, %16 : vector<8x1xf32>
    %cst_7 = arith.constant 0.001953125 : f32
    %18 = vector.broadcast %cst_7 : f32 to vector<8x1xf32>
    %19 = arith.mulf %13, %18 : vector<8x1xf32>
    %cst_8 = arith.constant 0.001953125 : f32
    %20 = vector.broadcast %cst_8 : f32 to vector<8x1xf32>
    %21 = arith.mulf %17, %20 : vector<8x1xf32>
    %22 = arith.mulf %19, %19 : vector<8x1xf32>
    %23 = arith.subf %21, %22 : vector<8x1xf32>
    %cst_9 = arith.constant 0.000000e+00 : f32
    %24 = vector.broadcast %cst_9 : f32 to vector<8x1xf32>
    %25 = arith.maximumf %23, %24 : vector<8x1xf32>
    %cst_10 = arith.constant 9.99999974E-6 : f32
    %26 = vector.broadcast %cst_10 : f32 to vector<8x1xf32>
    %27 = arith.addf %25, %26 : vector<8x1xf32>
    %28 = math.rsqrt %27 : vector<8x1xf32>
    %c0_11 = arith.constant 0 : index
    %c0_12 = arith.constant 0 : index
    %29 = vector.load %arg2[%c0_11, %c0_12] : memref<8x2xf32, #tpu.memory_space<vmem>>, vector<8x2xf32>
    %30 = vector.broadcast %28 : vector<8x1xf32> to vector<8x2xf32>
    %31 = arith.mulf %30, %29 : vector<8x2xf32>
    %c0_13 = arith.constant 0 : index
    %c0_14 = arith.constant 0 : index
    %32 = vector.load %arg3[%c0_13, %c0_14] : memref<8x2xf32, #tpu.memory_space<vmem>>, vector<8x2xf32>
    %33 = vector.broadcast %19 : vector<8x1xf32> to vector<8x2xf32>
    %34 = arith.mulf %33, %31 : vector<8x2xf32>
    %35 = arith.subf %32, %34 : vector<8x2xf32>
    %c0_15 = arith.constant 0 : index
    %c0_16 = arith.constant 0 : index
    %36 = vector.load %arg1[%c0_15, %c0_16] : memref<8x512xf32, #tpu.memory_space<vmem>>, vector<8x256xf32>
    %37 = vector.extract_strided_slice %31 {offsets = [0, 0], sizes = [8, 1], strides = [1, 1]} : vector<8x2xf32> to vector<8x1xf32>
    %38 = vector.broadcast %37 : vector<8x1xf32> to vector<8x256xf32>
    %39 = arith.mulf %36, %38 : vector<8x256xf32>
    %40 = vector.extract_strided_slice %35 {offsets = [0, 0], sizes = [8, 1], strides = [1, 1]} : vector<8x2xf32> to vector<8x1xf32>
    %41 = vector.broadcast %40 : vector<8x1xf32> to vector<8x256xf32>
    %42 = arith.addf %39, %41 : vector<8x256xf32>
    %c0_17 = arith.constant 0 : index
    %c0_18 = arith.constant 0 : index
    %43 = vector.load %arg4[%c0_17, %c0_18] : memref<8x512xf32, #tpu.memory_space<vmem>>, vector<8x256xf32>
    tpu.vector_store %arg4[%c0_17, %c0_18], %42 {strides = array<i32>} : memref<8x512xf32, #tpu.memory_space<vmem>>, vector<8x256xf32>,
    %c0_19 = arith.constant 0 : index
    %c256_20 = arith.constant 256 : index
    %44 = vector.load %arg1[%c0_19, %c256_20] : memref<8x512xf32, #tpu.memory_space<vmem>>, vector<8x256xf32>
    %45 = vector.extract_strided_slice %31 {offsets = [0, 1], sizes = [8, 1], strides = [1, 1]} : vector<8x2xf32> to vector<8x1xf32>
    %46 = vector.broadcast %45 : vector<8x1xf32> to vector<8x256xf32>
    %47 = arith.mulf %44, %46 : vector<8x256xf32>
    %48 = vector.extract_strided_slice %35 {offsets = [0, 1], sizes = [8, 1], strides = [1, 1]} : vector<8x2xf32> to vector<8x1xf32>
    %49 = vector.broadcast %48 : vector<8x1xf32> to vector<8x256xf32>
    %50 = arith.addf %47, %49 : vector<8x256xf32>
    %c0_21 = arith.constant 0 : index
    %c256_22 = arith.constant 256 : index
    %51 = vector.load %arg4[%c0_21, %c256_22] : memref<8x512xf32, #tpu.memory_space<vmem>>, vector<8x256xf32>
    tpu.vector_store %arg4[%c0_21, %c256_22], %50 {strides = array<i32>} : memref<8x512xf32, #tpu.memory_space<vmem>>, vector<8x256xf32>,
    return
  }
  func.func @transform_0(%arg0: i32) -> (i32, i32) {
    %c0_i32 = arith.constant 0 : i32
    %c0_i32_0 = arith.constant 0 : i32
    return %arg0, %c0_i32 : i32, i32
  }
  func.func @transform_1(%arg0: i32) -> (i32, i32) {
    %c0_i32 = arith.constant 0 : i32
    %c0_i32_0 = arith.constant 0 : i32
    %c0_i32_1 = arith.constant 0 : i32
    return %c0_i32, %c0_i32_0 : i32, i32
  }
  func.func @transform_2(%arg0: i32) -> (i32, i32) {
    %c0_i32 = arith.constant 0 : i32
    %c0_i32_0 = arith.constant 0 : i32
    %c0_i32_1 = arith.constant 0 : i32
    return %c0_i32, %c0_i32_0 : i32, i32
  }
  func.func @transform_3(%arg0: i32) -> (i32, i32) {
    %c0_i32 = arith.constant 0 : i32
    %c0_i32_0 = arith.constant 0 : i32
    return %arg0, %c0_i32 : i32, i32
  }
}

</mosaic_0001>

<llo_original>
// kernel: tpu_custom_call.1
$region0: #{tpu_custom_call.1}
  #allocation0 [shape = 'u32[]', space=smem, size = 0x4, offset = 0x4, fixed_abs, tag = 'smem constant byte address 0x4 - core index']
  #allocation1 [shape = 'u32[144,128]{1,0:T(1,128)}', space=vmem, size = 0x12000, scoped, tag = 'internal scratch']
  %s0 = inlined_call_operand.hbm [shape: f32[32,512], index: 0, kind: input, shape index: {}]
  %s1 = inlined_call_operand.vmem [shape: f32[8,2], index: 1, kind: input, shape index: {}]
  %s2 = inlined_call_operand.vmem [shape: f32[8,2], index: 2, kind: input, shape index: {}]
  %s3 = inlined_call_operand.hbm [shape: f32[32,512], index: 3, kind: output, shape index: {}]
  %s4 = sld [smem:[#allocation0]]
  $region49: #{tpu_custom_call.1} parent=0
    _
  %s6 = ssub.s32 1, %s4
  %s7 = scalar_select 0, %s6, %s4
  $region1: #{tpu_custom_call.1} parent=0
    #allocation2 [shape = 'u8[32768]{0}', space=vmem, size = 0x8000, scoped, tag = 'input window, operand 0']
    #allocation3 [shape = 's32[2]{0}', space=sflag, size = 0x8, scoped, tag = 'scoped memory for tpu_custom_call.1']
    #allocation4 [shape = 's32[2]{0}', space=sflag, size = 0x8, scoped, tag = 'scoped memory for tpu_custom_call.1']
    #allocation5 [shape = 'u8[32768]{0}', space=vmem, size = 0x8000, scoped, tag = 'output window, operand 0']
    %8 = vsyncpa [#allocation3], 0
    %s9 = scalar_lea.sflag [#allocation3], 1
    %10 = vsyncpa %s9, 0
    %11 = vsyncpa [#allocation4], 0
    %s12 = scalar_lea.sflag [#allocation4], 1
    %13 = vsyncpa %s12, 0
    loop: start=0, step=1, limit=6
    $region2: #{tpu_custom_call.1} parent=1 // loop_pre_header
      _
    $region3: #{tpu_custom_call.1} parent=1 // loop_header
      %s15 = sphi 0, %s19
      %p16 = scmp.ge.s32.totalorder %s15, 6
      %s25 = sphi 0, %s27
      %s28 = sphi 0, %s25
      %s29 = sphi 0, %s28
      %s45 = sphi 0, %s29
      %s49 = sphi 0, %s49
      %s51 = sphi 0, %s49
      %s52 = sphi 0, %s51
      %s66 = sphi 0, %s52
      %s70 = sphi 0, %s70
      %s72 = sphi 0, %s70
      %s73 = sphi 0, %s72
      %s87 = sphi 0, %s73
      %s93 = sphi 0, %s95
      %s96 = sphi 0, %s93
      %s97 = sphi 0, %s96
      %s113 = sphi 0, %s97
    $region4: #{tpu_custom_call.1} parent=1 // loop_header_branch
      %18 = sbr.rel (%p16) target = $region8
    $region5: #{tpu_custom_call.1} parent=1 // loop_body
      %s20 = ssub.s32 %s15, 1
      %s21 = ssub.s32 %s15, 2
      %s22 = sadd.s32 %s15, 1
      %s23 = ssub.s32 %s15, %s22
      %p24 = scmp.eq.s32.totalorder %s23, 0
      %s26 = sadd.s32 %s25, 1
      %s27 = scalar_select %p24, %s25, %s26
      %p30 = pneg %p24
      %p31 = scmp.eq.s32.totalorder %s15, 3
      %p32 = por %p30, %p31
      %p33 = scmp.ne.s32.totalorder %s25, %s28
      %p34 = scmp.eq.s32.totalorder %s15, 0
      %p35 = por %p33, %p34
      %p36 = scmp.ne.s32.totalorder %s25, %s28
      %p37 = scmp.eq.s32.totalorder %s20, 3
      %p38 = por %p36, %p37
      %p39 = scmp.ne.s32.totalorder %s28, %s29
      %p40 = scmp.eq.s32.totalorder %s20, 0
      %p41 = por %p39, %p40
      %p42 = scmp.ne.s32.totalorder %s28, %s29
      %p43 = scmp.eq.s32.totalorder %s21, 3
      %p44 = por %p42, %p43
      %p46 = scmp.ne.s32.totalorder %s29, %s45
      %p47 = scmp.eq.s32.totalorder %s21, 0
      %p48 = por %p46, %p47
      %s50 = sadd.s32 %s49, 1
      %p53 = scmp.eq.s32.totalorder %s15, 3
      %p54 = scmp.ne.s32.totalorder %s49, %s51
      %p55 = scmp.eq.s32.totalorder %s15, 0
      %p56 = por %p54, %p55
      %p57 = scmp.ne.s32.totalorder %s49, %s51
      %p58 = scmp.eq.s32.totalorder %s20, 3
      %p59 = por %p57, %p58
      %p60 = scmp.ne.s32.totalorder %s51, %s52
      %p61 = scmp.eq.s32.totalorder %s20, 0
      %p62 = por %p60, %p61
      %p63 = scmp.ne.s32.totalorder %s51, %s52
      %p64 = scmp.eq.s32.totalorder %s21, 3
      %p65 = por %p63, %p64
      %p67 = scmp.ne.s32.totalorder %s52, %s66
      %p68 = scmp.eq.s32.totalorder %s21, 0
      %p69 = por %p67, %p68
      %s71 = sadd.s32 %s70, 1
      %p74 = scmp.eq.s32.totalorder %s15, 3
      %p75 = scmp.ne.s32.totalorder %s70, %s72
      %p76 = scmp.eq.s32.totalorder %s15, 0
      %p77 = por %p75, %p76
      %p78 = scmp.ne.s32.totalorder %s70, %s72
      %p79 = scmp.eq.s32.totalorder %s20, 3
      %p80 = por %p78, %p79
      %p81 = scmp.ne.s32.totalorder %s72, %s73
      %p82 = scmp.eq.s32.totalorder %s20, 0
      %p83 = por %p81, %p82
      %p84 = scmp.ne.s32.totalorder %s72, %s73
      %p85 = scmp.eq.s32.totalorder %s21, 3
      %p86 = por %p84, %p85
      %p88 = scmp.ne.s32.totalorder %s73, %s87
      %p89 = scmp.eq.s32.totalorder %s21, 0
      %p90 = por %p88, %p89
      %s91 = ssub.s32 %s15, %s22
      %p92 = scmp.eq.s32.totalorder %s91, 0
      %s94 = sadd.s32 %s93, 1
      %s95 = scalar_select %p92, %s93, %s94
      %p98 = pneg %p92
      %p99 = scmp.eq.s32.totalorder %s15, 3
      %p100 = por %p98, %p99
      %p101 = scmp.ne.s32.totalorder %s93, %s96
      %p102 = scmp.eq.s32.totalorder %s15, 0
      %p103 = por %p101, %p102
      %p104 = scmp.ne.s32.totalorder %s93, %s96
      %p105 = scmp.eq.s32.totalorder %s20, 3
      %p106 = por %p104, %p105
      %p107 = scmp.ne.s32.totalorder %s96, %s97
      %p108 = scmp.eq.s32.totalorder %s20, 0
      %p109 = por %p107, %p108
      %p110 = scmp.ne.s32.totalorder %s96, %s97
      %p111 = scmp.eq.s32.totalorder %s21, 3
      %p112 = por %p110, %p111
      %p114 = scmp.ne.s32.totalorder %s97, %s113
      %p115 = scmp.eq.s32.totalorder %s21, 0
      %p116 = por %p114, %p115
      %p117 = scmp.le.s32.totalorder 1, %s15
      %p118 = scmp.lt.s32.totalorder %s15, 5
      %p119 = pnand %p117, %p118
      %p120 = pneg %p119
      // Predicated region
      $region9: #{tpu_custom_call.1} parent=5 // pred_check
        _
      $region10: #{tpu_custom_call.1} parent=5 // pred_check_branch
        %122 = sbr.rel (%p119) target = $region12
      $region11: #{tpu_custom_call.1} parent=5 // pred_region
        %s123 = ssub.s32 %s15, 1
        // Predicated region
        $region13: #{tpu_custom_call.1} parent=11 // pred_check
          %p124 = pneg %p62
        $region14: #{tpu_custom_call.1} parent=11 // pred_check_branch
          %126 = sbr.rel (%p124) target = $region16
        $region15: #{tpu_custom_call.1} parent=11 // pred_region
          _
        $region16: #{tpu_custom_call.1} parent=11 // pred_fallthru
          _
        // Predicated region
        $region17: #{tpu_custom_call.1} parent=11 // pred_check
          %p127 = pneg %p83
        $region18: #{tpu_custom_call.1} parent=11 // pred_check_branch
          %129 = sbr.rel (%p127) target = $region20
        $region19: #{tpu_custom_call.1} parent=11 // pred_region
          _
        $region20: #{tpu_custom_call.1} parent=11 // pred_fallthru
          _
      $region12: #{tpu_custom_call.1} parent=5 // pred_fallthru
        _
      %p130 = scmp.lt.s32.totalorder %s15, 4
      // Predicated region
      $region21: #{tpu_custom_call.1} parent=5 // pred_check
        %p131 = pneg %p130
      $region22: #{tpu_custom_call.1} parent=5 // pred_check_branch
        %133 = sbr.rel (%p131) target = $region24
      $region23: #{tpu_custom_call.1} parent=5 // pred_region
        // Predicated region
        $region25: #{tpu_custom_call.1} parent=23 // pred_check
          %p134 = pneg %p35
        $region26: #{tpu_custom_call.1} parent=23 // pred_check_branch
          %136 = sbr.rel (%p134) target = $region28
        $region27: #{tpu_custom_call.1} parent=23 // pred_region
          %s137 = sand.u32 %s25, 1
          %s138 = scalar_lea.sflag [#allocation3], %s137
          %s139 = sand.u32 %s25, 1
          %s140 = smul.addr %s139, 32
          %s141 = scalar_lea.vmem [#allocation2], %s140
          %s143 = ssub.s32 512, 512
          %144 = vsyncadd %s138, %s143
          %s145 = smul.addr %s15, 4
          %s146 = smul.addr %s145, 128
          %s147 = scalar_lea.hbm %s0, %s146
          %s149 = sshll.u32 %s141, 4
          %s150 = int_to_ptr.vmem [resolvable:$true] %s149
          %152 = dma.hbm_to_vmem [thread:$0]  %s147, 512, %s150, %s138
        $region28: #{tpu_custom_call.1} parent=23 // pred_fallthru
          _
      $region24: #{tpu_custom_call.1} parent=5 // pred_fallthru
        _
      %p153 = scmp.le.s32.totalorder 1, %s15
      %p154 = scmp.lt.s32.totalorder %s15, 5
      %p155 = pnand %p153, %p154
      %p156 = pneg %p155
      // Predicated region
      $region29: #{tpu_custom_call.1} parent=5 // pred_check
        _
      $region30: #{tpu_custom_call.1} parent=5 // pred_check_branch
        %158 = sbr.rel (%p155) target = $region32
      $region31: #{tpu_custom_call.1} parent=5 // pred_region
        %s159 = ssub.s32 %s15, 1
        %s160 = sand.u32 %s28, 1
        %s161 = scalar_lea.sflag [#allocation3], %s160
        %s162 = sand.u32 %s28, 1
        %s163 = smul.addr %s162, 32
        %s164 = scalar_lea.vmem [#allocation2], %s163
        // Predicated region
        $region33: #{tpu_custom_call.1} parent=31 // pred_check
          %p165 = pneg %p41
        $region34: #{tpu_custom_call.1} parent=31 // pred_check_branch
          %167 = sbr.rel (%p165) target = $region36
        $region35: #{tpu_custom_call.1} parent=31 // pred_region
          %168 = dma.done %s161, 512
        $region36: #{tpu_custom_call.1} parent=31 // pred_fallthru
          _
        %s169 = sand.u32 %s28, 1
        %s170 = scalar_lea.sflag [#allocation3], %s169
        %s171 = sand.u32 %s28, 1
        %s172 = smul.addr %s171, 32
        %s173 = scalar_lea.vmem [#allocation2], %s172
        %p174 = pneg %p41
        %p175 = pneg %p38
        %p176 = pneg %p62
        %p177 = pneg %p59
        %p178 = pneg %p83
        %p179 = pneg %p80
        %p180 = pneg %p109
        %p181 = pneg %p106
        %s182 = sand.u32 %s96, 1
        %s183 = scalar_lea.sflag [#allocation4], %s182
        %s184 = sand.u32 %s96, 1
        %s185 = smul.addr %s184, 32
        %s186 = scalar_lea.vmem [#allocation5], %s185
        %v187 = vld [vmem:[%s164] sm:$0xff]
        %v188 = vld [vmem:[%s164 + $0x8] sm:$0xff]
        %v189 = vadd.f32 %v187, %v188
        %190 = vadd.xlane.f32.xlu0 %v189
        %v191 = vpop.xlane.xlu0 %190
        %v192 = vadd.f32 %v191, 0.0
        %v193 = vmul.f32 %v187, %v187
        %v194 = vmul.f32 %v188, %v188
        %v195 = vadd.f32 %v193, %v194
        %196 = vadd.xlane.f32.xlu0 %v195
        %v197 = vpop.xlane.xlu0 %196
        %v198 = vadd.f32 %v197, 0.0
        %v199 = vld [vmem:[%s164 + $0x10] sm:$0xff]
        %v200 = vld [vmem:[%s164 + $0x18] sm:$0xff]
        %v201 = vadd.f32 %v199, %v200
        %202 = vadd.xlane.f32.xlu0 %v201
        %v203 = vpop.xlane.xlu0 %202
        %v204 = vadd.f32 %v192, %v203
        %v205 = vmul.f32 %v199, %v199
        %v206 = vmul.f32 %v200, %v200
        %v207 = vadd.f32 %v205, %v206
        %208 = vadd.xlane.f32.xlu0 %v207
        %v209 = vpop.xlane.xlu0 %208
        %v210 = vadd.f32 %v198, %v209
        %v211 = vmul.f32 %v204, 0.001953125
        %v212 = vmul.f32 %v210, 0.001953125
        %v213 = vmul.f32 %v211, %v211
        %v214 = vsub.f32 %v212, %v213
        %v215 = vmax.f32 %v214, 0.0
        %v216 = vadd.f32 %v215, 1e-05
        %v217 = vrsqrt.pop %v216
        %v218 = vld [vmem:[%s1] sm:$0xff]
        %v219 = vmul.f32 %v217, %v218
        %v220 = vld [vmem:[%s2] sm:$0xff]
        %v221 = vmul.f32 %v211, %v219
        %v222 = vsub.f32 %v220, %v221
        %224 = vset.pattern.permute.xlu0 0
        %225 = vperm.xlu0 %224, %v219
        %v226 = vpop.permute.xlu0 %225
        %v228 = vmul.f32 %v187, %v226
        %v229 = vmul.f32 %v188, %v226
        %231 = vset.pattern.permute.xlu0 0
        %232 = vperm.xlu0 %231, %v222
        %v233 = vpop.permute.xlu0 %232
        %v235 = vadd.f32 %v228, %v233
        %v236 = vadd.f32 %v229, %v233
        %237 = vst [vmem:[%s186] sm:$0xff] %v235
        %238 = vst [vmem:[%s186 + $0x8] sm:$0xff] %v236
        %v239 = vld [vmem:[%s164 + $0x10] sm:$0xff]
        %v240 = vld [vmem:[%s164 + $0x18] sm:$0xff]
        %241 = vset.pattern.permute.xlu0 1
        %242 = vperm.xlu0 %241, %v219
        %v243 = vpop.permute.xlu0 %242
        %v245 = vmul.f32 %v239, %v243
        %v246 = vmul.f32 %v240, %v243
        %247 = vset.pattern.permute.xlu0 1
        %248 = vperm.xlu0 %247, %v222
        %v249 = vpop.permute.xlu0 %248
        %v251 = vadd.f32 %v245, %v249
        %v252 = vadd.f32 %v246, %v249
        %253 = vst [vmem:[%s186 + $0x10] sm:$0xff] %v251
        %254 = vst [vmem:[%s186 + $0x18] sm:$0xff] %v252
        %s255 = sand.u32 %s96, 1
        %s256 = scalar_lea.sflag [#allocation4], %s255
        %s257 = sand.u32 %s96, 1
        %s258 = smul.addr %s257, 32
        %s259 = scalar_lea.vmem [#allocation5], %s258
        // Predicated region
        $region37: #{tpu_custom_call.1} parent=31 // pred_check
          %p260 = pneg %p106
        $region38: #{tpu_custom_call.1} parent=31 // pred_check_branch
          %262 = sbr.rel (%p260) target = $region40
        $region39: #{tpu_custom_call.1} parent=31 // pred_region
          %s264 = ssub.s32 512, 512
          %265 = vsyncadd %s256, %s264
          %s266 = smul.addr %s20, 4
          %s267 = smul.addr %s266, 128
          %s268 = scalar_lea.hbm %s3, %s267
          %s270 = sshll.u32 %s259, 4
          %s271 = int_to_ptr.vmem [resolvable:$true] %s270
          %273 = dma.vmem_to_hbm [thread:$0]  %s271, 512, %s268, %s256
        $region40: #{tpu_custom_call.1} parent=31 // pred_fallthru
          _
      $region32: #{tpu_custom_call.1} parent=5 // pred_fallthru
        _
      %p274 = scmp.le.s32.totalorder 2, %s15
      // Predicated region
      $region41: #{tpu_custom_call.1} parent=5 // pred_check
        %p275 = pneg %p274
      $region42: #{tpu_custom_call.1} parent=5 // pred_check_branch
        %277 = sbr.rel (%p275) target = $region44
      $region43: #{tpu_custom_call.1} parent=5 // pred_region
        %s278 = ssub.s32 %s15, 2
        // Predicated region
        $region45: #{tpu_custom_call.1} parent=43 // pred_check
          %p279 = pneg %p112
        $region46: #{tpu_custom_call.1} parent=43 // pred_check_branch
          %281 = sbr.rel (%p279) target = $region48
        $region47: #{tpu_custom_call.1} parent=43 // pred_region
          %s282 = sand.u32 %s97, 1
          %s283 = scalar_lea.sflag [#allocation4], %s282
          %s284 = sand.u32 %s97, 1
          %s285 = smul.addr %s284, 32
          %s286 = scalar_lea.vmem [#allocation5], %s285
          %287 = dma.done %s283, 512
        $region48: #{tpu_custom_call.1} parent=43 // pred_fallthru
          _
      $region44: #{tpu_custom_call.1} parent=5 // pred_fallthru
        _
    $region6: #{tpu_custom_call.1} parent=1 // loop_footer
      %s19 = sadd.s32 1, %s15
    $region7: #{tpu_custom_call.1} parent=1 // loop_footer_branch
      %14 = sbr.rel target = $region3
    $region8: #{tpu_custom_call.1} parent=1 // loop_exit
      _
    %288 = vsyncpa [#allocation3], 1
    %s289 = scalar_lea.sflag [#allocation3], 1
    %290 = vsyncpa %s289, 1
    %291 = vsyncpa [#allocation4], 1
    %s292 = scalar_lea.sflag [#allocation4], 1
    %293 = vsyncpa %s292, 1

</llo_original>
